<compile_context>
chip_gen: v5e
topology: v5e:2x2
jax: 0.10.0
libtpu: 0.0.40
codegen_flags: <defaults>
</compile_context>

<pallas_src>
import jax
import jax.numpy as jnp
from jax.experimental import pallas as pl
from jax.experimental.pallas import tpu as pltpu


def _tolerance_nonzero_kernel(logits_ref, labels_ref, le_ref, masks_ref, out_ref):
    # logits_ref: VMEM (TB, T*C)   float (any width; cast to f32 here)
    # labels_ref: VMEM (TB, T*C)   float or int8/bool (binary labels)
    # le_ref:     VMEM (TB, 2, T)  float  (event channels [1, 2], seq on lanes)
    # masks_ref:  VMEM (TB, 2*M, T) int8/bool, 0/1-valued; row 2*m+e = window m, event e
    # out_ref:    VMEM (1, 2, 128) f32 per-block partial sums (lane-dense writeback):
    #               row 0: sum over (TB, T, C) of BCE elements
    #               row 1: sum over (TB, M, 2) of loss_avg_seq
    x = logits_ref[...].astype(jnp.float32)            # (TB, T*C)
    y = labels_ref[...].astype(jnp.float32)            # (TB, T*C)

    # Numerically-stable BCEWithLogits elements: max(x,0) - x*y + log1p(exp(-|x|))
    bce = jnp.maximum(x, 0.0) - x * y + jnp.log1p(jnp.exp(-jnp.abs(x)))
    bce_sum = jnp.sum(bce)                              # divided by B*T*C in wrapper

    # ---- tolerance non-zero part, vectorized over the M windows ----
    le = le_ref[...].astype(jnp.float32)                # (TB, 2, T)
    mk = masks_ref[...]                                 # (TB, 2M, T) int8/bool
    num_masks = mk.shape[1] // 2

    # Broadcast the 2 event rows across the M windows (tile along sublanes so that
    # row 2*m+e of le_b is event row e, matching the mask layout).
    le_b = jnp.tile(le, (1, num_masks, 1))              # (TB, 2M, T)
    # 0/1 masks: compare+select instead of cast+multiply.  NOTE: fully-masked windows
    # max to 0 (not -inf) — intentional, matches the PyTorch module.
    masked = jnp.where(mk != 0, le_b, 0.0)              # (TB, 2M, T)
    mmax = jnp.max(masked, axis=-1, keepdims=True)      # (TB, 2M, 1)  lane reduce
    diff = jnp.maximum(le_b - mmax, 0.0)                # relu
    npos = jnp.sum(jnp.where(diff > 0.0, 1.0, 0.0), axis=-1, keepdims=True)
    ssum = jnp.sum(diff, axis=-1, keepdims=True)
    tol_sum = jnp.sum(ssum / jnp.maximum(npos, 1.0))    # divided by B*M*2 in wrapper

    # Lane-dense scalar writeback; wrapper reads lane 0.
    out_ref[0, 0:1, :] = jnp.full((1, 128), bce_sum, dtype=jnp.float32)
    out_ref[0, 1:2, :] = jnp.full((1, 128), tol_sum, dtype=jnp.float32)


def _choose_tb(batch, dma_row_bytes, work_row_bytes, budget_bytes):
    """Pick rows-per-grid-step TB.  TB divides B (no partial blocks ever read)."""
    divisors = [d for d in range(1, batch + 1) if batch % d == 0]
    per_row = 2 * dma_row_bytes + work_row_bytes        # x2: double-buffered inputs
    fitting = [d for d in divisors if d * per_row <= budget_bytes] or [1]
    tb = max(fitting)
    # Prefer >=2 grid steps (keeps both v7x TensorCores busy) as long as each block's
    # DMA stream stays >= ~1 MiB (HBM-roofline-efficient per the tiling guide).
    multi = [d for d in fitting if d < batch and d * dma_row_bytes >= (1 << 20)]
    if tb == batch and multi:
        tb = max(multi)
    return tb


@jax.jit
def tolerance_nonzero_loss(logits, labels, masks, loss_weight):
    """Pallas TPU implementation of ToleranceNonZeroLoss.forward.

    Args:
      logits: (B, T, C) float array, C >= 3 (channels 1 and 2 are the event channels).
      labels: (B, T, C) array (float for soft labels; int8/bool if binary -> 4x less DMA).
      masks:  (B, M, T, 2) 0/1-valued array.  Pass bool/int8 to minimize DMA bytes.
      loss_weight: (2,) array [w_bce, w_tolerance].
    """
    B, T, C = logits.shape
    assert C >= 3, "ToleranceNonZeroLoss needs >= 3 logit channels (uses channels [1, 2])."
    assert labels.shape == logits.shape
    assert masks.ndim == 4 and masks.shape[0] == B and masks.shape[2] == T and masks.shape[3] == 2
    M = masks.shape[1]

    # Dominant streams: free row-major reshapes, no HBM copies.
    logits_flat = logits.reshape(B, T * C)
    labels_flat = labels.reshape(B, T * C)
    # Tiny event-channel slab (2/C of logits) and mask re-layout (int8): the only
    # extra HBM passes, both small versus the flat logits/labels streams.
    logits_event = jnp.transpose(logits[:, :, 1:3], (0, 2, 1))            # (B, 2, T)
    masks_r = jnp.transpose(masks, (0, 1, 3, 2)).reshape(B, 2 * M, T)     # (B, 2M, T)

    # Generation-aware VMEM budget (v5e/v6e: 128 MiB physical -> ~96 MiB limit;
    # v7x: 64 MiB per TC -> ~48 MiB limit).
    try:
        vmem_cap = int(getattr(pltpu.get_tpu_info(), "vmem_capacity_bytes", 0)) or (64 << 20)
    except Exception:
        vmem_cap = 64 << 20
    vmem_limit = int(min(max(vmem_cap * 3 // 4, 32 << 20), 100 << 20))
    budget = int(vmem_limit * 0.8)

    dma_row = (T * C * logits.dtype.itemsize          # logits block
               + T * C * labels.dtype.itemsize        # labels block
               + 2 * T * logits.dtype.itemsize        # event-channel block
               + 2 * M * T * masks_r.dtype.itemsize)  # mask block
    work_row = 4 * (3 * T * C + 2 * T + 8 * M * T)    # rough in-kernel f32 working set
    tb = _choose_tb(B, dma_row, work_row, budget)
    nb = B // tb

    bytes_accessed = (logits_flat.size * logits.dtype.itemsize
                      + labels_flat.size * labels.dtype.itemsize
                      + logits_event.size * logits.dtype.itemsize
                      + masks_r.size * masks_r.dtype.itemsize
                      + nb * 2 * 128 * 4)
    cost = pl.CostEstimate(
        flops=7 * B * T * C + 7 * B * M * 2 * T,
        transcendentals=2 * B * T * C,
        bytes_accessed=bytes_accessed,
    )

    partials = pl.pallas_call(
        _tolerance_nonzero_kernel,
        out_shape=jax.ShapeDtypeStruct((nb, 2, 128), jnp.float32),
        grid_spec=pltpu.PrefetchScalarGridSpec(
            num_scalar_prefetch=0,
            grid=(nb,),
            in_specs=[
                pl.BlockSpec((tb, T * C), lambda b: (b, 0)),       # logits  (B, T*C)
                pl.BlockSpec((tb, T * C), lambda b: (b, 0)),       # labels  (B, T*C)
                pl.BlockSpec((tb, 2, T), lambda b: (b, 0, 0)),     # events  (B, 2, T)
                pl.BlockSpec((tb, 2 * M, T), lambda b: (b, 0, 0)), # masks   (B, 2M, T)
            ],
            out_specs=pl.BlockSpec((1, 2, 128), lambda b: (b, 0, 0)),
        ),
        compiler_params=pltpu.CompilerParams(
            dimension_semantics=("parallel",),   # shard blocks across v7x TensorCores
            vmem_limit_bytes=vmem_limit,
        ),
        cost_estimate=cost,
    )(logits_flat, labels_flat, logits_event, masks_r)

    w = loss_weight.astype(jnp.float32)
    bce_mean = jnp.sum(partials[:, 0, 0]) / float(B * T * C)
    tol_mean = jnp.sum(partials[:, 1, 0]) / float(B * M * 2)
    return w[0] * bce_mean + w[1] * tol_mean


def _reference_loss(logits, labels, masks, loss_weight):
    """Pure-JAX reference mirroring the PyTorch module exactly (original layout)."""
    x, y, m = logits, labels, masks
    bce = jnp.mean(jnp.maximum(x, 0.0) - x * y + jnp.log1p(jnp.exp(-jnp.abs(x))))
    le = x[:, :, 1:3]
    le_e = le[:, None, :, :]
    mmax = jnp.max(le_e * m, axis=2)
    diff = jnp.maximum(le_e - mmax[:, :, None, :], 0.0)
    npos = jnp.sum(diff > 0, axis=2).astype(jnp.float32)
    avg = jnp.sum(diff, axis=2) / (npos + (npos == 0.0))
    tol = jnp.mean(avg)
    return loss_weight[0] * bce + loss_weight[1] * tol


if __name__ == "__main__":
    # batch=2, sequence=256 (lane-dense multiple of 128), classes=4 (>=3), masks=4
    B, T, C, M = 2, 256, 4, 4

    key = jax.random.PRNGKey(0)
    k1, k2, k3 = jax.random.split(key, 3)

    logits = jax.random.normal(k1, (B, T, C), dtype=jnp.float32)
    labels_bool = jax.random.bernoulli(k2, 0.5, (B, T, C))
    masks_bool = jax.random.bernoulli(k3, 0.5, (B, M, T, 2))

    # Binary labels/masks -> int8 (4x less DMA).  Soft labels would be passed as float.
    labels_i8 = labels_bool.astype(jnp.int8)
    masks_i8 = masks_bool.astype(jnp.int8)

    # Deterministic module "parameters" (default loss_weight; label/pos weight = None).
    loss_weight = jnp.array([0.5, 0.5], dtype=jnp.float32)

    loss = tolerance_nonzero_loss(logits, labels_i8, masks_i8, loss_weight)
    jax.block_until_ready(loss)

    ref = _reference_loss(logits, labels_bool.astype(jnp.float32),
                          masks_bool.astype(jnp.float32), loss_weight)
    assert jnp.allclose(loss, ref, rtol=1e-4, atol=1e-5), (loss, ref)

    print("KERNEL_OK")
</pallas_src>

<mosaic_0001>
module attributes {stable_mosaic.version = 11 : i64} {
  func.func @_tolerance_nonzero_kernel(%arg0: i32, %arg1: memref<2x1024xf32, #tpu.memory_space<vmem>>, %arg2: memref<2x1024xi8, #tpu.memory_space<vmem>>, %arg3: memref<2x2x256xf32, #tpu.memory_space<vmem>>, %arg4: memref<2x8x256xi8, #tpu.memory_space<vmem>>, %arg5: memref<1x2x128xf32, #tpu.memory_space<vmem>>) attributes {dimension_semantics = [#tpu.dimension_semantics<parallel>], iteration_bounds = array<i64: 1>, scalar_prefetch = 0 : i64, scratch_operands = 0 : i64, tpu.core_type = #tpu.core_type<tc>, window_params = [{transform_indices = @transform_0, window_bounds = array<i64: 2, 1024>}, {transform_indices = @transform_1, window_bounds = array<i64: 2, 1024>}, {transform_indices = @transform_2, window_bounds = array<i64: 2, 2, 256>}, {transform_indices = @transform_3, window_bounds = array<i64: 2, 8, 256>}, {transform_indices = @transform_4, window_bounds = array<i64: 1, 2, 128>}]} {
    %c0 = arith.constant 0 : index
    %c0_0 = arith.constant 0 : index
    %0 = vector.load %arg1[%c0, %c0_0] : memref<2x1024xf32, #tpu.memory_space<vmem>>, vector<2x1024xf32>
    %c0_1 = arith.constant 0 : index
    %c0_2 = arith.constant 0 : index
    %1 = vector.load %arg2[%c0_1, %c0_2] : memref<2x1024xi8, #tpu.memory_space<vmem>>, vector<2x1024xi8>
    %2 = arith.sitofp %1 : vector<2x1024xi8> to vector<2x1024xf32>
    %cst = arith.constant 0.000000e+00 : f32
    %3 = vector.broadcast %cst : f32 to vector<2x1024xf32>
    %4 = arith.maximumf %0, %3 : vector<2x1024xf32>
    %5 = arith.mulf %0, %2 : vector<2x1024xf32>
    %6 = arith.subf %4, %5 : vector<2x1024xf32>
    %7 = math.absf %0 : vector<2x1024xf32>
    %cst_3 = arith.constant 0.000000e+00 : f32
    %8 = vector.broadcast %cst_3 : f32 to vector<2x1024xf32>
    %9 = arith.subf %8, %7 : vector<2x1024xf32>
    %10 = math.exp %9 : vector<2x1024xf32>
    %11 = math.log1p %10 : vector<2x1024xf32>
    %12 = arith.addf %6, %11 : vector<2x1024xf32>
    %13 = vector.shape_cast %12 : vector<2x1024xf32> to vector<1x2x1024xf32>
    %cst_4 = arith.constant dense<0.000000e+00> : vector<1xf32>
    %14 = vector.multi_reduction <add>, %13, %cst_4 [1, 2] : vector<1x2x1024xf32> to vector<1xf32>
    %15 = vector.shape_cast %14 : vector<1xf32> to vector<1x1x1xf32>
    %16 = vector.extract %15[0, 0, 0] : f32 from vector<1x1x1xf32>
    %c0_5 = arith.constant 0 : index
    %c0_6 = arith.constant 0 : index
    %c0_7 = arith.constant 0 : index
    %17 = vector.load %arg3[%c0_5, %c0_6, %c0_7] : memref<2x2x256xf32, #tpu.memory_space<vmem>>, vector<2x2x256xf32>
    %c0_8 = arith.constant 0 : index
    %c0_9 = arith.constant 0 : index
    %c0_10 = arith.constant 0 : index
    %18 = vector.load %arg4[%c0_8, %c0_9, %c0_10] : memref<2x8x256xi8, #tpu.memory_space<vmem>>, vector<2x8x256xi8>
    %19 = tpu.concatenate %17, %17, %17, %17 in 1 : vector<2x2x256xf32>, vector<2x2x256xf32>, vector<2x2x256xf32>, vector<2x2x256xf32> -> vector<2x8x256xf32>
    %c0_i8 = arith.constant 0 : i8
    %20 = vector.broadcast %c0_i8 : i8 to vector<2x8x256xi8>
    %21 = arith.cmpi ne, %18, %20 : vector<2x8x256xi8>
    %cst_11 = arith.constant 0.000000e+00 : f32
    %22 = vector.broadcast %cst_11 : f32 to vector<2x8x256xf32>
    %23 = arith.select %21, %19, %22 : vector<2x8x256xi1>, vector<2x8x256xf32>
    %cst_12 = arith.constant dense<0xFF800000> : vector<2x8xf32>
    %24 = vector.multi_reduction <maximumf>, %23, %cst_12 [2] : vector<2x8x256xf32> to vector<2x8xf32>
    %25 = vector.shape_cast %24 : vector<2x8xf32> to vector<2x8x1xf32>
    %26 = vector.broadcast %25 : vector<2x8x1xf32> to vector<2x8x256xf32>
    %27 = arith.subf %19, %26 : vector<2x8x256xf32>
    %cst_13 = arith.constant 0.000000e+00 : f32
    %28 = vector.broadcast %cst_13 : f32 to vector<2x8x256xf32>
    %29 = arith.maximumf %27, %28 : vector<2x8x256xf32>
    %cst_14 = arith.constant 0.000000e+00 : f32
    %30 = vector.broadcast %cst_14 : f32 to vector<2x8x256xf32>
    %31 = arith.cmpf ogt, %29, %30 : vector<2x8x256xf32>
    %cst_15 = arith.constant 1.000000e+00 : f32
    %cst_16 = arith.constant 0.000000e+00 : f32
    %32 = vector.broadcast %cst_15 : f32 to vector<2x8x256xf32>
    %33 = vector.broadcast %cst_16 : f32 to vector<2x8x256xf32>
    %34 = arith.select %31, %32, %33 : vector<2x8x256xi1>, vector<2x8x256xf32>
    %cst_17 = arith.constant dense<0.000000e+00> : vector<2x8xf32>
    %35 = vector.multi_reduction <add>, %34, %cst_17 [2] : vector<2x8x256xf32> to vector<2x8xf32>
    %36 = vector.shape_cast %35 : vector<2x8xf32> to vector<2x8x1xf32>
    %cst_18 = arith.constant dense<0.000000e+00> : vector<2x8xf32>
    %37 = vector.multi_reduction <add>, %29, %cst_18 [2] : vector<2x8x256xf32> to vector<2x8xf32>
    %38 = vector.shape_cast %37 : vector<2x8xf32> to vector<2x8x1xf32>
    %cst_19 = arith.constant 1.000000e+00 : f32
    %39 = vector.broadcast %cst_19 : f32 to vector<2x8x1xf32>
    %40 = arith.maximumf %36, %39 : vector<2x8x1xf32>
    %41 = arith.divf %38, %40 : vector<2x8x1xf32>
    %42 = vector.shape_cast %41 : vector<2x8x1xf32> to vector<1x2x8x1xf32>
    %cst_20 = arith.constant dense<0.000000e+00> : vector<1xf32>
    %43 = vector.multi_reduction <add>, %42, %cst_20 [1, 2, 3] : vector<1x2x8x1xf32> to vector<1xf32>
    %44 = vector.shape_cast %43 : vector<1xf32> to vector<1x1x1x1xf32>
    %45 = vector.extract %44[0, 0, 0, 0] : f32 from vector<1x1x1x1xf32>
    %46 = vector.broadcast %16 : f32 to vector<1x128xf32>
    %c0_21 = arith.constant 0 : index
    %c0_22 = arith.constant 0 : index
    %c0_23 = arith.constant 0 : index
    %47 = vector.load %arg5[%c0_21, %c0_22, %c0_23] : memref<1x2x128xf32, #tpu.memory_space<vmem>>, vector<1x1x128xf32>
    %48 = vector.shape_cast %47 : vector<1x1x128xf32> to vector<1x128xf32>
    %49 = vector.shape_cast %46 : vector<1x128xf32> to vector<1x1x128xf32>
    tpu.vector_store %arg5[%c0_21, %c0_22, %c0_23], %49 {strides = array<i32>} : memref<1x2x128xf32, #tpu.memory_space<vmem>>, vector<1x1x128xf32>,
    %50 = vector.broadcast %45 : f32 to vector<1x128xf32>
    %c0_24 = arith.constant 0 : index
    %c1 = arith.constant 1 : index
    %c0_25 = arith.constant 0 : index
    %51 = vector.load %arg5[%c0_24, %c1, %c0_25] : memref<1x2x128xf32, #tpu.memory_space<vmem>>, vector<1x1x128xf32>
    %52 = vector.shape_cast %51 : vector<1x1x128xf32> to vector<1x128xf32>
    %53 = vector.shape_cast %50 : vector<1x128xf32> to vector<1x1x128xf32>
    tpu.vector_store %arg5[%c0_24, %c1, %c0_25], %53 {strides = array<i32>} : memref<1x2x128xf32, #tpu.memory_space<vmem>>, vector<1x1x128xf32>,
    return
  }
  func.func @transform_0(%arg0: i32) -> (i32, i32) {
    %c0_i32 = arith.constant 0 : i32
    %c0_i32_0 = arith.constant 0 : i32
    return %arg0, %c0_i32 : i32, i32
  }
  func.func @transform_1(%arg0: i32) -> (i32, i32) {
    %c0_i32 = arith.constant 0 : i32
    %c0_i32_0 = arith.constant 0 : i32
    return %arg0, %c0_i32 : i32, i32
  }
  func.func @transform_2(%arg0: i32) -> (i32, i32, i32) {
    %c0_i32 = arith.constant 0 : i32
    %c0_i32_0 = arith.constant 0 : i32
    %c0_i32_1 = arith.constant 0 : i32
    return %arg0, %c0_i32, %c0_i32_0 : i32, i32, i32
  }
  func.func @transform_3(%arg0: i32) -> (i32, i32, i32) {
    %c0_i32 = arith.constant 0 : i32
    %c0_i32_0 = arith.constant 0 : i32
    %c0_i32_1 = arith.constant 0 : i32
    return %arg0, %c0_i32, %c0_i32_0 : i32, i32, i32
  }
  func.func @transform_4(%arg0: i32) -> (i32, i32, i32) {
    %c0_i32 = arith.constant 0 : i32
    %c0_i32_0 = arith.constant 0 : i32
    %c0_i32_1 = arith.constant 0 : i32
    return %arg0, %c0_i32, %c0_i32_0 : i32, i32, i32
  }
}

</mosaic_0001>

<llo_original>
// kernel: tolerance_nonzero_loss.1
$region0: #{tolerance_nonzero_loss.1}
  #allocation0 [shape = 'u32[]', space=smem, size = 0x4, offset = 0x4, fixed_abs, tag = 'smem constant byte address 0x4 - core index']
  #allocation1 [shape = 'u32[72,128]{1,0:T(1,128)}', space=vmem, size = 0x9000, scoped, tag = 'internal scratch']
  %s0 = inlined_call_operand.vmem [shape: f32[2,1024], index: 0, kind: input, shape index: {}]
  %s1 = inlined_call_operand.vmem [shape: s8[2,1024], index: 1, kind: input, shape index: {}]
  %s2 = inlined_call_operand.vmem [shape: f32[2,2,256], index: 2, kind: input, shape index: {}]
  %s3 = inlined_call_operand.vmem [shape: s8[2,8,256], index: 3, kind: input, shape index: {}]
  %s4 = inlined_call_operand.vmem [shape: f32[1,2,128], index: 4, kind: output, shape index: {}]
  %s5 = sld [smem:[#allocation0]]
  $region26: #{tolerance_nonzero_loss.1} parent=0
    _
  %s7 = ssub.s32 1, %s5
  %s8 = scalar_select 0, %s7, %s5
  // Predicated region
  $region2: #{tolerance_nonzero_loss.1} parent=0 // pred_check
    _
  $region3: #{tolerance_nonzero_loss.1} parent=0 // pred_check_branch
    %10 = sbr.rel (0) target = $region5
  $region4: #{tolerance_nonzero_loss.1} parent=0 // pred_region
    _
  $region5: #{tolerance_nonzero_loss.1} parent=0 // pred_fallthru
    _
  // Predicated region
  $region6: #{tolerance_nonzero_loss.1} parent=0 // pred_check
    _
  $region7: #{tolerance_nonzero_loss.1} parent=0 // pred_check_branch
    %12 = sbr.rel (0) target = $region9
  $region8: #{tolerance_nonzero_loss.1} parent=0 // pred_region
    _
  $region9: #{tolerance_nonzero_loss.1} parent=0 // pred_fallthru
    _
  // Predicated region
  $region10: #{tolerance_nonzero_loss.1} parent=0 // pred_check
    _
  $region11: #{tolerance_nonzero_loss.1} parent=0 // pred_check_branch
    %14 = sbr.rel (0) target = $region13
  $region12: #{tolerance_nonzero_loss.1} parent=0 // pred_region
    _
  $region13: #{tolerance_nonzero_loss.1} parent=0 // pred_fallthru
    _
  // Predicated region
  $region14: #{tolerance_nonzero_loss.1} parent=0 // pred_check
    _
  $region15: #{tolerance_nonzero_loss.1} parent=0 // pred_check_branch
    %16 = sbr.rel (0) target = $region17
  $region16: #{tolerance_nonzero_loss.1} parent=0 // pred_region
    _
  $region17: #{tolerance_nonzero_loss.1} parent=0 // pred_fallthru
    _
  %v19 = vld [vmem:[%s0] sm:$0xff]
  %v20 = vld [vmem:[%s0 + $0x8] sm:$0xff]
  %v21 = vld [vmem:[%s1] sm:$0xff]
  %v22 = vunpack.c.0.s8 %v21
  %v23 = vunpack.c.1.s8 %v21
  %v24 = vunpack.c.2.s8 %v21
  %v25 = vunpack.c.3.s8 %v21
  %v26 = vcvt.s32.f32 %v22
  %v27 = vcvt.s32.f32 %v23
  %v28 = vcvt.s32.f32 %v24
  %v29 = vcvt.s32.f32 %v25
  %v30 = vmax.f32 %v19, 0.0
  %v31 = vmax.f32 %v20, 0.0
  %v36 = vrot.slane %v26, 2
  %v37 = vrot.slane %v27, 4
  %v38 = vrot.slane %v27, 6
  %v39 = vrot.slane %v28, 2
  %v40 = vrot.slane %v29, 4
  %v41 = vrot.slane %v29, 6
  %vm42 = vcmask 1041408
  %v43 = vsel %vm42, %v26, %v36
  %vm44 = vcmask 1045508
  %v45 = vsel %vm44, %v37, %v38
  %vm46 = vcmask 1043456
  %v47 = vsel %vm46, %v43, %v45
  %v48 = vsel %vm42, %v28, %v39
  %v49 = vsel %vm44, %v40, %v41
  %v50 = vsel %vm46, %v48, %v49
  %v53 = vmul.f32 %v19, %v47
  %v54 = vmul.f32 %v20, %v50
  %v55 = vsub.f32 %v30, %v53
  %v56 = vsub.f32 %v31, %v54
  %v57 = vand.u32 2147483647, %v19
  %v58 = vand.u32 2147483647, %v20
  %v59 = vsub.f32 0.0, %v57
  %v60 = vsub.f32 0.0, %v58
  %v61 = vmul.f32 %v59, 1.442695
  %v62 = vpow.pop %v61
  %v63 = vmul.f32 %v60, 1.442695
  %v64 = vpow.pop %v63
  %v65 = vadd.f32 %v62, 1.0
  %v66 = vlog2.pop %v65
  %v67 = vmul.f32 %v66, 0.6931472
  %v68 = vmul.f32 -0.5, %v62
  %v69 = vadd.f32 %v68, 1.0
  %v70 = vmul.f32 %v69, %v62
  %v71 = vand.u32 2147483647, %v62
  %vm72 = vcmp.lt.f32.partialorder %v71, 0.0004427343
  %v73 = vsel %vm72, %v70, %v67
  %v74 = vadd.f32 %v64, 1.0
  %v75 = vlog2.pop %v74
  %v76 = vmul.f32 %v75, 0.6931472
  %v77 = vmul.f32 -0.5, %v64
  %v78 = vadd.f32 %v77, 1.0
  %v79 = vmul.f32 %v78, %v64
  %v80 = vand.u32 2147483647, %v64
  %vm81 = vcmp.lt.f32.partialorder %v80, 0.0004427343
  %v82 = vsel %vm81, %v79, %v76
  %v83 = vadd.f32 %v55, %v73
  %v84 = vadd.f32 %v56, %v82
  %87 = vst [vmem:[#allocation1] ss:$4 sm:$0xff] %v83
  %s88 = scalar_lea.vmem [#allocation1], 32
  %89 = vst [vmem:[%s88] ss:$4 sm:$0xff] %v84
  %v90 = vld.sshfl [vmem:[#allocation1] sm:$0xff pattern:$0x73625140]
  %v91 = vld.sshfl [vmem:[#allocation1 + $0x8] sm:$0xff pattern:$0x73625140]
  %v92 = vld.sshfl [vmem:[#allocation1 + $0x10] sm:$0xff pattern:$0x73625140]
  %v93 = vld.sshfl [vmem:[#allocation1 + $0x18] sm:$0xff pattern:$0x73625140]
  %v94 = vld.sshfl [vmem:[#allocation1 + $0x20] sm:$0xff pattern:$0x73625140]
  %v95 = vld.sshfl [vmem:[#allocation1 + $0x28] sm:$0xff pattern:$0x73625140]
  %v96 = vld.sshfl [vmem:[#allocation1 + $0x30] sm:$0xff pattern:$0x73625140]
  %v97 = vld.sshfl [vmem:[#allocation1 + $0x38] sm:$0xff pattern:$0x73625140]
  %v106 = vsel %vm42, %v90, 0.0
  %v107 = vsel %vm42, %v91, 0.0
  %v108 = vadd.f32 %v106, %v107
  %v109 = vsel %vm42, %v92, 0.0
  %v110 = vadd.f32 %v108, %v109
  %v111 = vsel %vm42, %v93, 0.0
  %v112 = vadd.f32 %v110, %v111
  %v113 = vsel %vm42, %v94, 0.0
  %v114 = vadd.f32 %v112, %v113
  %v115 = vsel %vm42, %v95, 0.0
  %v116 = vadd.f32 %v114, %v115
  %v117 = vsel %vm42, %v96, 0.0
  %v118 = vadd.f32 %v116, %v117
  %v119 = vsel %vm42, %v97, 0.0
  %v120 = vadd.f32 %v118, %v119
  %121 = vadd.xlane.f32.xlu0 %v120
  %v122 = vpop.xlane.xlu0 %121
  %v123 = vrot.slane %v122, 4
  %v124 = vadd.f32 %v122, %v123
  %v125 = vrot.slane %v124, 2
  %v126 = vadd.f32 %v124, %v125
  %v127 = vrot.slane %v126, 1
  %v128 = vadd.f32 %v126, %v127
  %s129 = vtos %v128
  %v130 = vld [vmem:[%s2] sm:$0xf]
  %v131 = vld [vmem:[%s2 + $0x4] sm:$0xf]
  %v132 = vld [vmem:[%s3] sm:$0xf]
  %v133 = vld [vmem:[%s3 + $0x4] sm:$0xf]
  %136 = vst [vmem:[#allocation1] ss:$4 sm:$0xff] %v130
  %v137 = vld.sshfl [vmem:[#allocation1] sm:$0xff pattern:$0x73625140]
  %v138 = vld.sshfl [vmem:[#allocation1 + $0x8] sm:$0xff pattern:$0x73625140]
  %s139 = scalar_lea.vmem [#allocation1], 32
  %140 = vst [vmem:[%s139] ss:$4 sm:$0xff] %v131
  %v141 = vld.sshfl [vmem:[#allocation1 + $0x20] sm:$0xff pattern:$0x73625140]
  %v142 = vld.sshfl [vmem:[#allocation1 + $0x28] sm:$0xff pattern:$0x73625140]
  %s147 = scalar_lea.vmem [#allocation1], 1
  %148 = vst [vmem:[%s147] ss:$4 sm:$0xff] %v130
  %v149 = vld.sshfl [vmem:[#allocation1] sm:$0xff pattern:$0x73625140]
  %v150 = vld.sshfl [vmem:[#allocation1 + $0x8] sm:$0xff pattern:$0x73625140]
  %s151 = scalar_lea.vmem [#allocation1], 33
  %152 = vst [vmem:[%s151] ss:$4 sm:$0xff] %v131
  %v153 = vld.sshfl [vmem:[#allocation1 + $0x20] sm:$0xff pattern:$0x73625140]
  %v154 = vld.sshfl [vmem:[#allocation1 + $0x28] sm:$0xff pattern:$0x73625140]
  %s159 = scalar_lea.vmem [#allocation1], 2
  %160 = vst [vmem:[%s159] ss:$4 sm:$0xff] %v130
  %v161 = vld.sshfl [vmem:[#allocation1] sm:$0xff pattern:$0x73625140]
  %v162 = vld.sshfl [vmem:[#allocation1 + $0x8] sm:$0xff pattern:$0x73625140]
  %s163 = scalar_lea.vmem [#allocation1], 34
  %164 = vst [vmem:[%s163] ss:$4 sm:$0xff] %v131
  %v165 = vld.sshfl [vmem:[#allocation1 + $0x20] sm:$0xff pattern:$0x73625140]
  %v166 = vld.sshfl [vmem:[#allocation1 + $0x28] sm:$0xff pattern:$0x73625140]
  %s171 = scalar_lea.vmem [#allocation1], 3
  %172 = vst [vmem:[%s171] ss:$4 sm:$0xff] %v130
  %v173 = vld.sshfl [vmem:[#allocation1] sm:$0xff pattern:$0x73625140]
  %v174 = vld.sshfl [vmem:[#allocation1 + $0x8] sm:$0xff pattern:$0x73625140]
  %s175 = scalar_lea.vmem [#allocation1], 35
  %176 = vst [vmem:[%s175] ss:$4 sm:$0xff] %v131
  %v177 = vld.sshfl [vmem:[#allocation1 + $0x20] sm:$0xff pattern:$0x73625140]
  %v178 = vld.sshfl [vmem:[#allocation1 + $0x28] sm:$0xff pattern:$0x73625140]
  %v183 = vsel %vm42, %v137, %v149
  %v184 = vsel %vm42, %v138, %v150
  %v185 = vsel %vm42, %v141, %v153
  %v186 = vsel %vm42, %v142, %v154
  %v187 = vsel %vm46, %v183, %v161
  %v188 = vsel %vm46, %v184, %v162
  %v189 = vsel %vm46, %v185, %v165
  %v190 = vsel %vm46, %v186, %v166
  %vm191 = vcmask 1045504
  %v192 = vsel %vm191, %v187, %v173
  %v193 = vsel %vm191, %v188, %v174
  %v194 = vsel %vm191, %v189, %v177
  %v195 = vsel %vm191, %v190, %v178
  %vm196 = vnez %v132
  %vm197 = vnez %v133
  %v198 = vsel %vm196, 16843009, 0
  %v199 = vsel %vm197, 16843009, 0
  %v200 = vunpack.c.0.s8 %v198
  %v201 = vunpack.c.1.s8 %v198
  %v202 = vunpack.c.0.s8 %v199
  %v203 = vunpack.c.1.s8 %v199
  %vm204 = vcmp.ne.s32.totalorder %v200, 0
  %vm205 = vcmp.ne.s32.totalorder %v201, 0
  %vm206 = vcmp.ne.s32.totalorder %v202, 0
  %vm207 = vcmp.ne.s32.totalorder %v203, 0
  %v208 = vsel %vm204, %v192, 0.0
  %v209 = vsel %vm205, %v193, 0.0
  %v210 = vsel %vm206, %v194, 0.0
  %v211 = vsel %vm207, %v195, 0.0
  %v212 = vmax.f32 %v208, %v209
  %213 = vmax.xlane.f32.xlu0 %v212
  %v214 = vpop.xlane.xlu0 %213
  %v215 = vmax.f32 %v210, %v211
  %216 = vmax.xlane.f32.xlu0 %v215
  %v217 = vpop.xlane.xlu0 %216
  %v218 = vsub.f32 %v192, %v214
  %v219 = vsub.f32 %v193, %v214
  %v220 = vsub.f32 %v194, %v217
  %v221 = vsub.f32 %v195, %v217
  %v222 = vmax.f32 %v218, 0.0
  %v223 = vmax.f32 %v219, 0.0
  %v224 = vmax.f32 %v220, 0.0
  %v225 = vmax.f32 %v221, 0.0
  %vm226 = vcmp.gt.f32.partialorder %v222, 0.0
  %vm227 = vcmp.gt.f32.partialorder %v223, 0.0
  %vm228 = vcmp.gt.f32.partialorder %v224, 0.0
  %vm229 = vcmp.gt.f32.partialorder %v225, 0.0
  %v230 = vsel %vm226, 1.0, 0.0
  %v231 = vsel %vm227, 1.0, 0.0
  %v232 = vsel %vm228, 1.0, 0.0
  %v233 = vsel %vm229, 1.0, 0.0
  %v234 = vadd.f32 %v230, %v231
  %235 = vadd.xlane.f32.xlu0 %v234
  %v236 = vpop.xlane.xlu0 %235
  %v237 = vadd.f32 %v232, %v233
  %238 = vadd.xlane.f32.xlu0 %v237
  %v239 = vpop.xlane.xlu0 %238
  %v240 = vadd.f32 %v222, %v223
  %241 = vadd.xlane.f32.xlu0 %v240
  %v242 = vpop.xlane.xlu0 %241
  %v243 = vadd.f32 %v224, %v225
  %244 = vadd.xlane.f32.xlu0 %v243
  %v245 = vpop.xlane.xlu0 %244
  %v246 = vmax.f32 %v236, 1.0
  %v247 = vmax.f32 %v239, 1.0
  %v248 = vrcp.pop %v246
  %v249 = vmul.f32 %v246, %v248
  %v250 = vsub.f32 1.0, %v249
  %v251 = vmul.f32 %v248, %v250
  %v252 = vadd.f32 %v248, %v251
  %vm253 = vweird.f32 %v246
  %vm254 = vweird.f32 %v248
  %vm255 = vmor %vm253, %vm254
  %v256 = vsel %vm255, %v248, %v252
  %v257 = vand.u32 2147483647, %v246
  %vm258 = vcmp.eq.f32.partialorder %v257, 8.507059e+37
  %v259 = vand.u32 %v246, 2147483648
  %v260 = vor.u32 1.1754944e-38, %v259
  %v261 = vsel %vm258, %v260, %v256
  %v262 = vmul.f32 %v242, %v261
  %v263 = vrcp.pop %v247
  %v264 = vmul.f32 %v247, %v263
  %v265 = vsub.f32 1.0, %v264
  %v266 = vmul.f32 %v263, %v265
  %v267 = vadd.f32 %v263, %v266
  %vm268 = vweird.f32 %v247
  %vm269 = vweird.f32 %v263
  %vm270 = vmor %vm268, %vm269
  %v271 = vsel %vm270, %v263, %v267
  %v272 = vand.u32 2147483647, %v247
  %vm273 = vcmp.eq.f32.partialorder %v272, 8.507059e+37
  %v274 = vand.u32 %v247, 2147483648
  %v275 = vor.u32 1.1754944e-38, %v274
  %v276 = vsel %vm273, %v275, %v271
  %v277 = vmul.f32 %v245, %v276
  %vm278 = vcmask 7168
  %v279 = vsel %vm278, %v262, 0.0
  %v280 = vsel %vm278, %v277, 0.0
  %v281 = vadd.f32 %v279, %v280
  %282 = vadd.xlane.f32.xlu0 %v281
  %v283 = vpop.xlane.xlu0 %282
  %v284 = vrot.slane %v283, 4
  %v285 = vadd.f32 %v283, %v284
  %v286 = vrot.slane %v285, 2
  %v287 = vadd.f32 %v285, %v286
  %v288 = vrot.slane %v287, 1
  %v289 = vadd.f32 %v287, %v288
  %s290 = vtos %v289
  %v291 = vstv %s129
  %292 = vst [vmem:[%s4] sm:$0x1] %v291
  %v293 = vstv %s290
  %294 = vst [vmem:[%s4 + $0x1] sm:$0x1] %v293
  // Predicated region
  $region18: #{tolerance_nonzero_loss.1} parent=0 // pred_check
    _
  $region19: #{tolerance_nonzero_loss.1} parent=0 // pred_check_branch
    %296 = sbr.rel (0) target = $region21
  $region20: #{tolerance_nonzero_loss.1} parent=0 // pred_region
    _
  $region21: #{tolerance_nonzero_loss.1} parent=0 // pred_fallthru
    _
  // Predicated region
  $region22: #{tolerance_nonzero_loss.1} parent=0 // pred_check
    _
  $region23: #{tolerance_nonzero_loss.1} parent=0 // pred_check_branch
    %298 = sbr.rel (0) target = $region25
  $region24: #{tolerance_nonzero_loss.1} parent=0 // pred_region
    _
  $region25: #{tolerance_nonzero_loss.1} parent=0 // pred_fallthru
    _

</llo_original>
